<compile_context>
chip_gen: v5e
topology: v5e:2x2
jax: 0.10.0
libtpu: 0.0.40
codegen_flags: <defaults>
</compile_context>

<pallas_src>
import functools
import math

import jax
import jax.numpy as jnp
from jax import lax
from jax.experimental import pallas as pl
from jax.experimental.pallas import tpu as pltpu


def _mha_kernel(xq_ref, xk_ref, xv_ref, bias_ref,
                wq_ref, bq_ref, wk_ref, bk_ref, wv_ref, bv_ref,
                wo_ref, bo_ref, out_ref):
    """One (batch, head) grid step.  All refs are 2-D (leading dims squeezed).

    xq/xk/xv : (S, D)     activations for batch b (fetched once per b)
    bias     : (1, S)     additive key mask bias {0, -1e9} for batch b
    wq/wk/wv : (D, d_k)   per-head W.T slab (scale folded into wq/bq)
    bq/bk/bv : (1, d_k)
    wo       : (d_k, D)   per-head row-slab of Wo.T
    bo       : (1, D)
    out      : (S, D)     accumulated across the head grid axis
    """
    h = pl.program_id(1)

    def project(x_ref, w_ref, b_ref):
        y = jnp.dot(x_ref[...], w_ref[...], preferred_element_type=jnp.float32)
        return y + b_ref[...]

    qp = project(xq_ref, wq_ref, bq_ref)          # (S, d_k), already scaled
    kp = project(xk_ref, wk_ref, bk_ref)          # (S, d_k)
    vp = project(xv_ref, wv_ref, bv_ref)          # (S, d_k)

    # scores[q, k] = qp[q, :] . kp[k, :]  (contract last dims, no kp.T copy)
    scores = lax.dot_general(qp, kp, (((1,), (1,)), ((), ())),
                             preferred_element_type=jnp.float32)   # (S, S)
    scores = scores + bias_ref[...]               # f32 additive mask bias

    # softmax over keys; exact reciprocal on the (S, 1) row sums.
    m = jnp.max(scores, axis=-1, keepdims=True)
    e = jnp.exp(scores - m)
    attn = e * pl.reciprocal(jnp.sum(e, axis=-1, keepdims=True), approx=False)

    oh = jnp.dot(attn, vp, preferred_element_type=jnp.float32)     # (S, d_k)
    contrib = jnp.dot(oh, wo_ref[...],
                      preferred_element_type=jnp.float32)          # (S, D)

    # Head concat + output projection folded into an accumulation over the
    # head grid axis: out = bo + sum_h oh_h @ Wo.T[h*d_k:(h+1)*d_k, :]
    @pl.when(h == 0)
    def _init():
        out_ref[...] = jnp.broadcast_to(bo_ref[...], out_ref.shape)

    out_ref[...] += contrib


def mha_forward(q, k, v, mask, params, num_heads):
    """q, k, v: (B, S, D) float32; mask: (B, 1, 1, S) float32 (0.0 == masked)."""
    B, S, D = q.shape
    H = num_heads
    d_k = D // H
    scale = 1.0 / math.sqrt(d_k)
    wq, bq, wk, bk, wv, bv, wo, bo = params

    # ---- one-time host-side parameter re-arrangement ---------------------
    # qkv:  per-head slabs of W.T -> (H, D, d_k), biases -> (H, 1, d_k)
    # out:  per-head row-slabs of Wo.T -> (H, d_k, D)
    # The 1/sqrt(d_k) scale is folded into the Q slab/bias.
    def qkv_slabs(w, b, s=1.0):
        w_h = jnp.transpose(w.reshape(H, d_k, D), (0, 2, 1)) * s    # (H, D, d_k)
        b_h = b.reshape(H, 1, d_k) * s                              # (H, 1, d_k)
        return w_h, b_h

    wq_h, bq_h = qkv_slabs(wq, bq, scale)
    wk_h, bk_h = qkv_slabs(wk, bk)
    wv_h, bv_h = qkv_slabs(wv, bv)
    wo_h = wo.T.reshape(H, d_k, D)                                  # (H, d_k, D)

    # Additive mask bias, precomputed once on the host: (B, 1, S) of {0, -1e9}.
    bias = jnp.where(mask.reshape(B, 1, S) == 0.0, -1000000000.0, 0.0)
    bias = bias.astype(jnp.float32)

    act_spec = lambda: pl.BlockSpec((None, S, D), lambda b, h: (b, 0, 0))
    wslab_spec = lambda: pl.BlockSpec((None, D, d_k), lambda b, h: (h, 0, 0))
    bslab_spec = lambda: pl.BlockSpec((None, 1, d_k), lambda b, h: (h, 0, 0))

    grid_spec = pltpu.PrefetchScalarGridSpec(
        num_scalar_prefetch=0,
        grid=(B, H),                                   # reduction (head) axis last
        in_specs=[
            act_spec(), act_spec(), act_spec(),        # q, k, v activations
            pl.BlockSpec((None, 1, S), lambda b, h: (b, 0, 0)),   # mask bias
            wslab_spec(), bslab_spec(),                # q projection
            wslab_spec(), bslab_spec(),                # k projection
            wslab_spec(), bslab_spec(),                # v projection
            pl.BlockSpec((None, d_k, D), lambda b, h: (h, 0, 0)),  # Wo.T slab
            pl.BlockSpec((1, D), lambda b, h: (0, 0)),             # bo
        ],
        out_specs=pl.BlockSpec((None, S, D), lambda b, h: (b, 0, 0)),
    )

    return pl.pallas_call(
        _mha_kernel,
        out_shape=jax.ShapeDtypeStruct((B, S, D), jnp.float32),
        grid_spec=grid_spec,
        compiler_params=pltpu.CompilerParams(
            dimension_semantics=("parallel", "arbitrary")),
    )(q, k, v, bias, wq_h, bq_h, wk_h, bk_h, wv_h, bv_h, wo_h, bo)


def mha_reference(q, k, v, mask, params, num_heads):
    """Pure-JAX reference mirroring the PyTorch module exactly."""
    wq, bq, wk, bk, wv, bv, wo, bo = params
    B, S, D = q.shape
    d_k = D // num_heads

    def lin(x, w, b):
        return x @ w.T + b

    def split(x):  # (B,S,D) -> (B,H,S,d_k)
        return x.reshape(B, S, num_heads, d_k).transpose(0, 2, 1, 3)

    qh = split(lin(q, wq, bq))
    kh = split(lin(k, wk, bk))
    vh = split(lin(v, wv, bv))

    scores = jnp.einsum("bhqd,bhkd->bhqk", qh, kh) / math.sqrt(d_k)
    scores = jnp.where(mask == 0.0, -1000000000.0, scores)
    attn = jax.nn.softmax(scores, axis=-1)
    out = jnp.einsum("bhqk,bhkd->bhqd", attn, vh)
    concat = out.transpose(0, 2, 1, 3).reshape(B, S, D)
    return lin(concat, wo, bo)


if __name__ == "__main__":
    B, S, D, H = 2, 8, 32, 4

    key = jax.random.PRNGKey(0)
    keys = jax.random.split(key, 12)

    q = jax.random.normal(keys[0], (B, S, D), dtype=jnp.float32)
    k = jax.random.normal(keys[1], (B, S, D), dtype=jnp.float32)
    v = jax.random.normal(keys[2], (B, S, D), dtype=jnp.float32)

    # Mask: mostly ones; mask out the last two keys of the second batch element.
    mask = jnp.ones((B, 1, 1, S), dtype=jnp.float32)
    mask = mask.at[1, 0, 0, -2:].set(0.0)

    # Deterministic parameter init (nn.Linear-like scale).
    bound = 1.0 / math.sqrt(D)

    def uinit(kk, shape):
        return jax.random.uniform(kk, shape, jnp.float32, -bound, bound)

    wq, bq = uinit(keys[3], (D, D)), uinit(keys[4], (1, D))
    wk, bk = uinit(keys[5], (D, D)), uinit(keys[6], (1, D))
    wv, bv = uinit(keys[7], (D, D)), uinit(keys[8], (1, D))
    wo, bo = uinit(keys[9], (D, D)), uinit(keys[10], (1, D))
    params = (wq, bq, wk, bk, wv, bv, wo, bo)

    out = mha_forward(q, k, v, mask, params, H)
    out = jax.block_until_ready(out)

    ref = mha_reference(q, k, v, mask, params, H)
    assert out.shape == (B, S, D)
    # Exact (non-approx) softmax reciprocal -> tight tolerance restored.
    assert jnp.allclose(out, ref, atol=1e-4, rtol=1e-4), "mismatch vs reference"

    print("KERNEL_OK")
</pallas_src>

<mosaic_0001>
module attributes {stable_mosaic.version = 11 : i64} {
  func.func @_mha_kernel(%arg0: i32, %arg1: i32, %arg2: memref<1x8x32xf32, #tpu.memory_space<vmem>>, %arg3: memref<1x8x32xf32, #tpu.memory_space<vmem>>, %arg4: memref<1x8x32xf32, #tpu.memory_space<vmem>>, %arg5: memref<1x1x8xf32, #tpu.memory_space<vmem>>, %arg6: memref<1x32x8xf32, #tpu.memory_space<vmem>>, %arg7: memref<1x1x8xf32, #tpu.memory_space<vmem>>, %arg8: memref<1x32x8xf32, #tpu.memory_space<vmem>>, %arg9: memref<1x1x8xf32, #tpu.memory_space<vmem>>, %arg10: memref<1x32x8xf32, #tpu.memory_space<vmem>>, %arg11: memref<1x1x8xf32, #tpu.memory_space<vmem>>, %arg12: memref<1x8x32xf32, #tpu.memory_space<vmem>>, %arg13: memref<1x32xf32, #tpu.memory_space<vmem>>, %arg14: memref<1x8x32xf32, #tpu.memory_space<vmem>>) attributes {dimension_semantics = [#tpu.dimension_semantics<parallel>, #tpu.dimension_semantics<arbitrary>], iteration_bounds = array<i64: 2, 4>, scalar_prefetch = 0 : i64, scratch_operands = 0 : i64, tpu.core_type = #tpu.core_type<tc>, window_params = [{transform_indices = @transform_0, window_bounds = array<i64: 1, 8, 32>}, {transform_indices = @transform_1, window_bounds = array<i64: 1, 8, 32>}, {transform_indices = @transform_2, window_bounds = array<i64: 1, 8, 32>}, {transform_indices = @transform_3, window_bounds = array<i64: 1, 1, 8>}, {transform_indices = @transform_4, window_bounds = array<i64: 1, 32, 8>}, {transform_indices = @transform_5, window_bounds = array<i64: 1, 1, 8>}, {transform_indices = @transform_6, window_bounds = array<i64: 1, 32, 8>}, {transform_indices = @transform_7, window_bounds = array<i64: 1, 1, 8>}, {transform_indices = @transform_8, window_bounds = array<i64: 1, 32, 8>}, {transform_indices = @transform_9, window_bounds = array<i64: 1, 1, 8>}, {transform_indices = @transform_10, window_bounds = array<i64: 1, 8, 32>}, {pipeline_mode = #tpu.pipeline_mode<synchronous>, transform_indices = @transform_11, window_bounds = array<i64: 1, 32>}, {transform_indices = @transform_12, window_bounds = array<i64: 1, 8, 32>}]} {
    %c0 = arith.constant 0 : index
    %c0_0 = arith.constant 0 : index
    %c0_1 = arith.constant 0 : index
    %0 = vector.load %arg2[%c0, %c0_0, %c0_1] : memref<1x8x32xf32, #tpu.memory_space<vmem>>, vector<1x8x32xf32>
    %1 = vector.shape_cast %0 : vector<1x8x32xf32> to vector<8x32xf32>
    %c0_2 = arith.constant 0 : index
    %c0_3 = arith.constant 0 : index
    %c0_4 = arith.constant 0 : index
    %2 = vector.load %arg6[%c0_2, %c0_3, %c0_4] : memref<1x32x8xf32, #tpu.memory_space<vmem>>, vector<1x32x8xf32>
    %3 = vector.shape_cast %2 : vector<1x32x8xf32> to vector<32x8xf32>
    %cst = arith.constant dense<0.000000e+00> : vector<8x8xf32>
    %4 = tpu.matmul %1, %3, %cst {dimension_numbers = #tpu.dot_dimension_numbers<[1], [0], [0], [1], [0, 0, 1, 1], [], []>} : vector<8x32xf32>, vector<32x8xf32>, vector<8x8xf32> -> vector<8x8xf32>
    %c0_5 = arith.constant 0 : index
    %c0_6 = arith.constant 0 : index
    %c0_7 = arith.constant 0 : index
    %5 = vector.load %arg7[%c0_5, %c0_6, %c0_7] : memref<1x1x8xf32, #tpu.memory_space<vmem>>, vector<1x1x8xf32>
    %6 = vector.shape_cast %5 : vector<1x1x8xf32> to vector<1x8xf32>
    %7 = vector.broadcast %6 : vector<1x8xf32> to vector<8x8xf32>
    %8 = arith.addf %4, %7 : vector<8x8xf32>
    %c0_8 = arith.constant 0 : index
    %c0_9 = arith.constant 0 : index
    %c0_10 = arith.constant 0 : index
    %9 = vector.load %arg3[%c0_8, %c0_9, %c0_10] : memref<1x8x32xf32, #tpu.memory_space<vmem>>, vector<1x8x32xf32>
    %10 = vector.shape_cast %9 : vector<1x8x32xf32> to vector<8x32xf32>
    %c0_11 = arith.constant 0 : index
    %c0_12 = arith.constant 0 : index
    %c0_13 = arith.constant 0 : index
    %11 = vector.load %arg8[%c0_11, %c0_12, %c0_13] : memref<1x32x8xf32, #tpu.memory_space<vmem>>, vector<1x32x8xf32>
    %12 = vector.shape_cast %11 : vector<1x32x8xf32> to vector<32x8xf32>
    %cst_14 = arith.constant dense<0.000000e+00> : vector<8x8xf32>
    %13 = tpu.matmul %10, %12, %cst_14 {dimension_numbers = #tpu.dot_dimension_numbers<[1], [0], [0], [1], [0, 0, 1, 1], [], []>} : vector<8x32xf32>, vector<32x8xf32>, vector<8x8xf32> -> vector<8x8xf32>
    %c0_15 = arith.constant 0 : index
    %c0_16 = arith.constant 0 : index
    %c0_17 = arith.constant 0 : index
    %14 = vector.load %arg9[%c0_15, %c0_16, %c0_17] : memref<1x1x8xf32, #tpu.memory_space<vmem>>, vector<1x1x8xf32>
    %15 = vector.shape_cast %14 : vector<1x1x8xf32> to vector<1x8xf32>
    %16 = vector.broadcast %15 : vector<1x8xf32> to vector<8x8xf32>
    %17 = arith.addf %13, %16 : vector<8x8xf32>
    %c0_18 = arith.constant 0 : index
    %c0_19 = arith.constant 0 : index
    %c0_20 = arith.constant 0 : index
    %18 = vector.load %arg4[%c0_18, %c0_19, %c0_20] : memref<1x8x32xf32, #tpu.memory_space<vmem>>, vector<1x8x32xf32>
    %19 = vector.shape_cast %18 : vector<1x8x32xf32> to vector<8x32xf32>
    %c0_21 = arith.constant 0 : index
    %c0_22 = arith.constant 0 : index
    %c0_23 = arith.constant 0 : index
    %20 = vector.load %arg10[%c0_21, %c0_22, %c0_23] : memref<1x32x8xf32, #tpu.memory_space<vmem>>, vector<1x32x8xf32>
    %21 = vector.shape_cast %20 : vector<1x32x8xf32> to vector<32x8xf32>
    %cst_24 = arith.constant dense<0.000000e+00> : vector<8x8xf32>
    %22 = tpu.matmul %19, %21, %cst_24 {dimension_numbers = #tpu.dot_dimension_numbers<[1], [0], [0], [1], [0, 0, 1, 1], [], []>} : vector<8x32xf32>, vector<32x8xf32>, vector<8x8xf32> -> vector<8x8xf32>
    %c0_25 = arith.constant 0 : index
    %c0_26 = arith.constant 0 : index
    %c0_27 = arith.constant 0 : index
    %23 = vector.load %arg11[%c0_25, %c0_26, %c0_27] : memref<1x1x8xf32, #tpu.memory_space<vmem>>, vector<1x1x8xf32>
    %24 = vector.shape_cast %23 : vector<1x1x8xf32> to vector<1x8xf32>
    %25 = vector.broadcast %24 : vector<1x8xf32> to vector<8x8xf32>
    %26 = arith.addf %22, %25 : vector<8x8xf32>
    %cst_28 = arith.constant dense<0.000000e+00> : vector<8x8xf32>
    %27 = tpu.matmul %8, %17, %cst_28 {dimension_numbers = #tpu.dot_dimension_numbers<[1], [1], [0], [0], [0, 0, 1, 0], [], []>} : vector<8x8xf32>, vector<8x8xf32>, vector<8x8xf32> -> vector<8x8xf32>
    %c0_29 = arith.constant 0 : index
    %c0_30 = arith.constant 0 : index
    %c0_31 = arith.constant 0 : index
    %28 = vector.load %arg5[%c0_29, %c0_30, %c0_31] : memref<1x1x8xf32, #tpu.memory_space<vmem>>, vector<1x1x8xf32>
    %29 = vector.shape_cast %28 : vector<1x1x8xf32> to vector<1x8xf32>
    %30 = vector.broadcast %29 : vector<1x8xf32> to vector<8x8xf32>
    %31 = arith.addf %27, %30 : vector<8x8xf32>
    %cst_32 = arith.constant dense<0xFF800000> : vector<8xf32>
    %32 = vector.multi_reduction <maximumf>, %31, %cst_32 [1] : vector<8x8xf32> to vector<8xf32>
    %33 = vector.shape_cast %32 : vector<8xf32> to vector<8x1xf32>
    %34 = vector.broadcast %33 : vector<8x1xf32> to vector<8x8xf32>
    %35 = arith.subf %31, %34 : vector<8x8xf32>
    %36 = math.exp %35 : vector<8x8xf32>
    %cst_33 = arith.constant dense<0.000000e+00> : vector<8xf32>
    %37 = vector.multi_reduction <add>, %36, %cst_33 [1] : vector<8x8xf32> to vector<8xf32>
    %38 = vector.shape_cast %37 : vector<8xf32> to vector<8x1xf32>
    %39 = tpu.reciprocal %38 : vector<8x1xf32> -> vector<8x1xf32>
    %40 = vector.broadcast %39 : vector<8x1xf32> to vector<8x8xf32>
    %41 = arith.mulf %36, %40 : vector<8x8xf32>
    %cst_34 = arith.constant dense<0.000000e+00> : vector<8x8xf32>
    %42 = tpu.matmul %41, %26, %cst_34 {dimension_numbers = #tpu.dot_dimension_numbers<[1], [0], [0], [1], [0, 0, 1, 1], [], []>} : vector<8x8xf32>, vector<8x8xf32>, vector<8x8xf32> -> vector<8x8xf32>
    %c0_35 = arith.constant 0 : index
    %c0_36 = arith.constant 0 : index
    %c0_37 = arith.constant 0 : index
    %43 = vector.load %arg12[%c0_35, %c0_36, %c0_37] : memref<1x8x32xf32, #tpu.memory_space<vmem>>, vector<1x8x32xf32>
    %44 = vector.shape_cast %43 : vector<1x8x32xf32> to vector<8x32xf32>
    %cst_38 = arith.constant dense<0.000000e+00> : vector<8x32xf32>
    %45 = tpu.matmul %42, %44, %cst_38 {dimension_numbers = #tpu.dot_dimension_numbers<[1], [0], [0], [1], [0, 0, 1, 1], [], []>} : vector<8x8xf32>, vector<8x32xf32>, vector<8x32xf32> -> vector<8x32xf32>
    %c0_i32 = arith.constant 0 : i32
    %46 = arith.cmpi eq, %arg1, %c0_i32 : i32
    %47 = arith.extui %46 : i1 to i32
    %c0_i32_39 = arith.constant 0 : i32
    %48 = arith.cmpi ne, %47, %c0_i32_39 : i32
    scf.if %48 {
      %c0_46 = arith.constant 0 : index
      %c0_47 = arith.constant 0 : index
      %55 = vector.load %arg13[%c0_46, %c0_47] : memref<1x32xf32, #tpu.memory_space<vmem>>, vector<1x32xf32>
      %56 = vector.shape_cast %55 : vector<1x32xf32> to vector<1x32xf32>
      %57 = vector.broadcast %56 : vector<1x32xf32> to vector<8x32xf32>
      %c0_48 = arith.constant 0 : index
      %c0_49 = arith.constant 0 : index
      %c0_50 = arith.constant 0 : index
      %58 = vector.load %arg14[%c0_48, %c0_49, %c0_50] : memref<1x8x32xf32, #tpu.memory_space<vmem>>, vector<1x8x32xf32>
      %59 = vector.shape_cast %58 : vector<1x8x32xf32> to vector<8x32xf32>
      %60 = vector.shape_cast %57 : vector<8x32xf32> to vector<1x8x32xf32>
      tpu.vector_store %arg14[%c0_48, %c0_49, %c0_50], %60 {strides = array<i32>} : memref<1x8x32xf32, #tpu.memory_space<vmem>>, vector<1x8x32xf32>,
    } else {
    }
    %c0_40 = arith.constant 0 : index
    %c0_41 = arith.constant 0 : index
    %c0_42 = arith.constant 0 : index
    %49 = vector.load %arg14[%c0_40, %c0_41, %c0_42] : memref<1x8x32xf32, #tpu.memory_space<vmem>>, vector<1x8x32xf32>
    %50 = vector.shape_cast %49 : vector<1x8x32xf32> to vector<8x32xf32>
    %51 = arith.addf %50, %45 : vector<8x32xf32>
    %c0_43 = arith.constant 0 : index
    %c0_44 = arith.constant 0 : index
    %c0_45 = arith.constant 0 : index
    %52 = vector.load %arg14[%c0_43, %c0_44, %c0_45] : memref<1x8x32xf32, #tpu.memory_space<vmem>>, vector<1x8x32xf32>
    %53 = vector.shape_cast %52 : vector<1x8x32xf32> to vector<8x32xf32>
    %54 = vector.shape_cast %51 : vector<8x32xf32> to vector<1x8x32xf32>
    tpu.vector_store %arg14[%c0_43, %c0_44, %c0_45], %54 {strides = array<i32>} : memref<1x8x32xf32, #tpu.memory_space<vmem>>, vector<1x8x32xf32>,
    return
  }
  func.func @transform_0(%arg0: i32, %arg1: i32) -> (i32, i32, i32) {
    %c0_i32 = arith.constant 0 : i32
    %c0_i32_0 = arith.constant 0 : i32
    %c0_i32_1 = arith.constant 0 : i32
    return %arg0, %c0_i32, %c0_i32_0 : i32, i32, i32
  }
  func.func @transform_1(%arg0: i32, %arg1: i32) -> (i32, i32, i32) {
    %c0_i32 = arith.constant 0 : i32
    %c0_i32_0 = arith.constant 0 : i32
    %c0_i32_1 = arith.constant 0 : i32
    return %arg0, %c0_i32, %c0_i32_0 : i32, i32, i32
  }
  func.func @transform_2(%arg0: i32, %arg1: i32) -> (i32, i32, i32) {
    %c0_i32 = arith.constant 0 : i32
    %c0_i32_0 = arith.constant 0 : i32
    %c0_i32_1 = arith.constant 0 : i32
    return %arg0, %c0_i32, %c0_i32_0 : i32, i32, i32
  }
  func.func @transform_3(%arg0: i32, %arg1: i32) -> (i32, i32, i32) {
    %c0_i32 = arith.constant 0 : i32
    %c0_i32_0 = arith.constant 0 : i32
    %c0_i32_1 = arith.constant 0 : i32
    return %arg0, %c0_i32, %c0_i32_0 : i32, i32, i32
  }
  func.func @transform_4(%arg0: i32, %arg1: i32) -> (i32, i32, i32) {
    %c0_i32 = arith.constant 0 : i32
    %c0_i32_0 = arith.constant 0 : i32
    %c0_i32_1 = arith.constant 0 : i32
    return %arg1, %c0_i32, %c0_i32_0 : i32, i32, i32
  }
  func.func @transform_5(%arg0: i32, %arg1: i32) -> (i32, i32, i32) {
    %c0_i32 = arith.constant 0 : i32
    %c0_i32_0 = arith.constant 0 : i32
    %c0_i32_1 = arith.constant 0 : i32
    return %arg1, %c0_i32, %c0_i32_0 : i32, i32, i32
  }
  func.func @transform_6(%arg0: i32, %arg1: i32) -> (i32, i32, i32) {
    %c0_i32 = arith.constant 0 : i32
    %c0_i32_0 = arith.constant 0 : i32
    %c0_i32_1 = arith.constant 0 : i32
    return %arg1, %c0_i32, %c0_i32_0 : i32, i32, i32
  }
  func.func @transform_7(%arg0: i32, %arg1: i32) -> (i32, i32, i32) {
    %c0_i32 = arith.constant 0 : i32
    %c0_i32_0 = arith.constant 0 : i32
    %c0_i32_1 = arith.constant 0 : i32
    return %arg1, %c0_i32, %c0_i32_0 : i32, i32, i32
  }
  func.func @transform_8(%arg0: i32, %arg1: i32) -> (i32, i32, i32) {
    %c0_i32 = arith.constant 0 : i32
    %c0_i32_0 = arith.constant 0 : i32
    %c0_i32_1 = arith.constant 0 : i32
    return %arg1, %c0_i32, %c0_i32_0 : i32, i32, i32
  }
  func.func @transform_9(%arg0: i32, %arg1: i32) -> (i32, i32, i32) {
    %c0_i32 = arith.constant 0 : i32
    %c0_i32_0 = arith.constant 0 : i32
    %c0_i32_1 = arith.constant 0 : i32
    return %arg1, %c0_i32, %c0_i32_0 : i32, i32, i32
  }
  func.func @transform_10(%arg0: i32, %arg1: i32) -> (i32, i32, i32) {
    %c0_i32 = arith.constant 0 : i32
    %c0_i32_0 = arith.constant 0 : i32
    %c0_i32_1 = arith.constant 0 : i32
    return %arg1, %c0_i32, %c0_i32_0 : i32, i32, i32
  }
  func.func @transform_11(%arg0: i32, %arg1: i32) -> (i32, i32) {
    %c0_i32 = arith.constant 0 : i32
    %c0_i32_0 = arith.constant 0 : i32
    %c0_i32_1 = arith.constant 0 : i32
    return %c0_i32, %c0_i32_0 : i32, i32
  }
  func.func @transform_12(%arg0: i32, %arg1: i32) -> (i32, i32, i32) {
    %c0_i32 = arith.constant 0 : i32
    %c0_i32_0 = arith.constant 0 : i32
    %c0_i32_1 = arith.constant 0 : i32
    return %arg0, %c0_i32, %c0_i32_0 : i32, i32, i32
  }
}

</mosaic_0001>

<llo_original>
// kernel: tpu_custom_call.1
$region0: #{tpu_custom_call.1}
  #allocation0 [shape = 'u32[]', space=smem, size = 0x4, offset = 0x4, fixed_abs, tag = 'smem constant byte address 0x4 - core index']
  #allocation1 [shape = 'u32[72,128]{1,0:T(1,128)}', space=vmem, size = 0x9000, scoped, tag = 'internal scratch']
  %s0 = inlined_call_operand.vmem [shape: f32[2,8,32], index: 0, kind: input, shape index: {}]
  %s1 = inlined_call_operand.vmem [shape: f32[2,8,32], index: 1, kind: input, shape index: {}]
  %s2 = inlined_call_operand.vmem [shape: f32[2,8,32], index: 2, kind: input, shape index: {}]
  %s3 = inlined_call_operand.vmem [shape: f32[2,1,8], index: 3, kind: input, shape index: {}]
  %s4 = inlined_call_operand.vmem [shape: f32[4,32,8], index: 4, kind: input, shape index: {}]
  %s5 = inlined_call_operand.vmem [shape: f32[4,1,8], index: 5, kind: input, shape index: {}]
  %s6 = inlined_call_operand.vmem [shape: f32[4,32,8], index: 6, kind: input, shape index: {}]
  %s7 = inlined_call_operand.vmem [shape: f32[4,1,8], index: 7, kind: input, shape index: {}]
  %s8 = inlined_call_operand.vmem [shape: f32[4,32,8], index: 8, kind: input, shape index: {}]
  %s9 = inlined_call_operand.vmem [shape: f32[4,1,8], index: 9, kind: input, shape index: {}]
  %s10 = inlined_call_operand.vmem [shape: f32[4,8,32], index: 10, kind: input, shape index: {}]
  %s11 = inlined_call_operand.vmem [shape: f32[1,32], index: 11, kind: input, shape index: {}]
  %s12 = inlined_call_operand.hbm [shape: f32[2,8,32], index: 12, kind: output, shape index: {}]
  %s13 = sld [smem:[#allocation0]]
  $region85: #{tpu_custom_call.1} parent=0
    _
  %s15 = ssub.s32 1, %s13
  %s16 = scalar_select 0, %s15, %s13
  $region1: #{tpu_custom_call.1} parent=0
    #allocation2 [shape = 'u8[8192]{0}', space=vmem, size = 0x2000, scoped, tag = 'output window, operand 0']
    #allocation3 [shape = 's32[2]{0}', space=sflag, size = 0x8, scoped, tag = 'scoped memory for tpu_custom_call.1']
    %17 = vsyncpa [#allocation3], 0
    %s18 = scalar_lea.sflag [#allocation3], 1
    %19 = vsyncpa %s18, 0
    loop: start=0, step=1, limit=10
    $region2: #{tpu_custom_call.1} parent=1 // loop_pre_header
      _
    $region3: #{tpu_custom_call.1} parent=1 // loop_header
      %s21 = sphi 0, %s25
      %p22 = scmp.ge.s32.totalorder %s21, 10
      %s28 = sphi 0, %s40
      %s29 = sphi 0, %s36
      %s30 = sphi 0, %s28
      %s31 = sphi 0, %s29
      %s32 = sphi 0, %s30
      %s33 = sphi 0, %s31
      %s43 = sphi 0, %s45
      %s46 = sphi 0, %s43
      %s47 = sphi 0, %s46
      %s63 = sphi 0, %s47
      %s69 = sphi 0, %s71
      %s72 = sphi 0, %s69
      %s73 = sphi 0, %s72
      %s89 = sphi 0, %s73
      %s95 = sphi 0, %s97
      %s98 = sphi 0, %s95
      %s99 = sphi 0, %s98
      %s115 = sphi 0, %s99
      %s121 = sphi 0, %s123
      %s124 = sphi 0, %s121
      %s125 = sphi 0, %s124
      %s141 = sphi 0, %s125
      %s147 = sphi 0, %s149
      %s150 = sphi 0, %s147
      %s151 = sphi 0, %s150
      %s167 = sphi 0, %s151
      %s173 = sphi 0, %s175
      %s176 = sphi 0, %s173
      %s177 = sphi 0, %s176
      %s193 = sphi 0, %s177
      %s199 = sphi 0, %s201
      %s202 = sphi 0, %s199
      %s203 = sphi 0, %s202
      %s219 = sphi 0, %s203
      %s225 = sphi 0, %s227
      %s228 = sphi 0, %s225
      %s229 = sphi 0, %s228
      %s245 = sphi 0, %s229
      %s251 = sphi 0, %s253
      %s254 = sphi 0, %s251
      %s255 = sphi 0, %s254
      %s271 = sphi 0, %s255
      %s277 = sphi 0, %s279
      %s280 = sphi 0, %s277
      %s281 = sphi 0, %s280
      %s297 = sphi 0, %s281
      %s303 = sphi 0, %s305
      %s306 = sphi 0, %s303
      %s307 = sphi 0, %s306
      %s323 = sphi 0, %s307
      %s327 = sphi 0, %s327
      %s329 = sphi 0, %s327
      %s330 = sphi 0, %s329
      %s344 = sphi 0, %s330
      %s350 = sphi 0, %s352
      %s353 = sphi 0, %s350
      %s354 = sphi 0, %s353
      %s370 = sphi 0, %s354
    $region4: #{tpu_custom_call.1} parent=1 // loop_header_branch
      %24 = sbr.rel (%p22) target = $region8
    $region5: #{tpu_custom_call.1} parent=1 // loop_body
      %s26 = ssub.s32 %s21, 1
      %s27 = ssub.s32 %s21, 2
      %s34 = sadd.s32 1, %s29
      %p35 = scmp.ge.s32.totalorder %s34, 4
      %s36 = scalar_select %p35, 0, %s34
      %s37 = sadd.s32 1, %s28
      %s38 = scalar_select %p35, %s37, %s28
      %p39 = scmp.ge.s32.totalorder %s38, 2
      %s40 = scalar_select %p39, 0, %s38
      %s41 = ssub.s32 %s28, %s40
      %p42 = scmp.eq.s32.totalorder %s41, 0
      %s44 = sadd.s32 %s43, 1
      %s45 = scalar_select %p42, %s43, %s44
      %p48 = pneg %p42
      %p49 = scmp.eq.s32.totalorder %s21, 7
      %p50 = por %p48, %p49
      %p51 = scmp.ne.s32.totalorder %s43, %s46
      %p52 = scmp.eq.s32.totalorder %s21, 0
      %p53 = por %p51, %p52
      %p54 = scmp.ne.s32.totalorder %s43, %s46
      %p55 = scmp.eq.s32.totalorder %s26, 7
      %p56 = por %p54, %p55
      %p57 = scmp.ne.s32.totalorder %s46, %s47
      %p58 = scmp.eq.s32.totalorder %s26, 0
      %p59 = por %p57, %p58
      %p60 = scmp.ne.s32.totalorder %s46, %s47
      %p61 = scmp.eq.s32.totalorder %s27, 7
      %p62 = por %p60, %p61
      %p64 = scmp.ne.s32.totalorder %s47, %s63
      %p65 = scmp.eq.s32.totalorder %s27, 0
      %p66 = por %p64, %p65
      %s67 = ssub.s32 %s28, %s40
      %p68 = scmp.eq.s32.totalorder %s67, 0
      %s70 = sadd.s32 %s69, 1
      %s71 = scalar_select %p68, %s69, %s70
      %p74 = pneg %p68
      %p75 = scmp.eq.s32.totalorder %s21, 7
      %p76 = por %p74, %p75
      %p77 = scmp.ne.s32.totalorder %s69, %s72
      %p78 = scmp.eq.s32.totalorder %s21, 0
      %p79 = por %p77, %p78
      %p80 = scmp.ne.s32.totalorder %s69, %s72
      %p81 = scmp.eq.s32.totalorder %s26, 7
      %p82 = por %p80, %p81
      %p83 = scmp.ne.s32.totalorder %s72, %s73
      %p84 = scmp.eq.s32.totalorder %s26, 0
      %p85 = por %p83, %p84
      %p86 = scmp.ne.s32.totalorder %s72, %s73
      %p87 = scmp.eq.s32.totalorder %s27, 7
      %p88 = por %p86, %p87
      %p90 = scmp.ne.s32.totalorder %s73, %s89
      %p91 = scmp.eq.s32.totalorder %s27, 0
      %p92 = por %p90, %p91
      %s93 = ssub.s32 %s28, %s40
      %p94 = scmp.eq.s32.totalorder %s93, 0
      %s96 = sadd.s32 %s95, 1
      %s97 = scalar_select %p94, %s95, %s96
      %p100 = pneg %p94
      %p101 = scmp.eq.s32.totalorder %s21, 7
      %p102 = por %p100, %p101
      %p103 = scmp.ne.s32.totalorder %s95, %s98
      %p104 = scmp.eq.s32.totalorder %s21, 0
      %p105 = por %p103, %p104
      %p106 = scmp.ne.s32.totalorder %s95, %s98
      %p107 = scmp.eq.s32.totalorder %s26, 7
      %p108 = por %p106, %p107
      %p109 = scmp.ne.s32.totalorder %s98, %s99
      %p110 = scmp.eq.s32.totalorder %s26, 0
      %p111 = por %p109, %p110
      %p112 = scmp.ne.s32.totalorder %s98, %s99
      %p113 = scmp.eq.s32.totalorder %s27, 7
      %p114 = por %p112, %p113
      %p116 = scmp.ne.s32.totalorder %s99, %s115
      %p117 = scmp.eq.s32.totalorder %s27, 0
      %p118 = por %p116, %p117
      %s119 = ssub.s32 %s28, %s40
      %p120 = scmp.eq.s32.totalorder %s119, 0
      %s122 = sadd.s32 %s121, 1
      %s123 = scalar_select %p120, %s121, %s122
      %p126 = pneg %p120
      %p127 = scmp.eq.s32.totalorder %s21, 7
      %p128 = por %p126, %p127
      %p129 = scmp.ne.s32.totalorder %s121, %s124
      %p130 = scmp.eq.s32.totalorder %s21, 0
      %p131 = por %p129, %p130
      %p132 = scmp.ne.s32.totalorder %s121, %s124
      %p133 = scmp.eq.s32.totalorder %s26, 7
      %p134 = por %p132, %p133
      %p135 = scmp.ne.s32.totalorder %s124, %s125
      %p136 = scmp.eq.s32.totalorder %s26, 0
      %p137 = por %p135, %p136
      %p138 = scmp.ne.s32.totalorder %s124, %s125
      %p139 = scmp.eq.s32.totalorder %s27, 7
      %p140 = por %p138, %p139
      %p142 = scmp.ne.s32.totalorder %s125, %s141
      %p143 = scmp.eq.s32.totalorder %s27, 0
      %p144 = por %p142, %p143
      %s145 = ssub.s32 %s29, %s36
      %p146 = scmp.eq.s32.totalorder %s145, 0
      %s148 = sadd.s32 %s147, 1
      %s149 = scalar_select %p146, %s147, %s148
      %p152 = pneg %p146
      %p153 = scmp.eq.s32.totalorder %s21, 7
      %p154 = por %p152, %p153
      %p155 = scmp.ne.s32.totalorder %s147, %s150
      %p156 = scmp.eq.s32.totalorder %s21, 0
      %p157 = por %p155, %p156
      %p158 = scmp.ne.s32.totalorder %s147, %s150
      %p159 = scmp.eq.s32.totalorder %s26, 7
      %p160 = por %p158, %p159
      %p161 = scmp.ne.s32.totalorder %s150, %s151
      %p162 = scmp.eq.s32.totalorder %s26, 0
      %p163 = por %p161, %p162
      %p164 = scmp.ne.s32.totalorder %s150, %s151
      %p165 = scmp.eq.s32.totalorder %s27, 7
      %p166 = por %p164, %p165
      %p168 = scmp.ne.s32.totalorder %s151, %s167
      %p169 = scmp.eq.s32.totalorder %s27, 0
      %p170 = por %p168, %p169
      %s171 = ssub.s32 %s29, %s36
      %p172 = scmp.eq.s32.totalorder %s171, 0
      %s174 = sadd.s32 %s173, 1
      %s175 = scalar_select %p172, %s173, %s174
      %p178 = pneg %p172
      %p179 = scmp.eq.s32.totalorder %s21, 7
      %p180 = por %p178, %p179
      %p181 = scmp.ne.s32.totalorder %s173, %s176
      %p182 = scmp.eq.s32.totalorder %s21, 0
      %p183 = por %p181, %p182
      %p184 = scmp.ne.s32.totalorder %s173, %s176
      %p185 = scmp.eq.s32.totalorder %s26, 7
      %p186 = por %p184, %p185
      %p187 = scmp.ne.s32.totalorder %s176, %s177
      %p188 = scmp.eq.s32.totalorder %s26, 0
      %p189 = por %p187, %p188
      %p190 = scmp.ne.s32.totalorder %s176, %s177
      %p191 = scmp.eq.s32.totalorder %s27, 7
      %p192 = por %p190, %p191
      %p194 = scmp.ne.s32.totalorder %s177, %s193
      %p195 = scmp.eq.s32.totalorder %s27, 0
      %p196 = por %p194, %p195
      %s197 = ssub.s32 %s29, %s36
      %p198 = scmp.eq.s32.totalorder %s197, 0
      %s200 = sadd.s32 %s199, 1
      %s201 = scalar_select %p198, %s199, %s200
      %p204 = pneg %p198
      %p205 = scmp.eq.s32.totalorder %s21, 7
      %p206 = por %p204, %p205
      %p207 = scmp.ne.s32.totalorder %s199, %s202
      %p208 = scmp.eq.s32.totalorder %s21, 0
      %p209 = por %p207, %p208
      %p210 = scmp.ne.s32.totalorder %s199, %s202
      %p211 = scmp.eq.s32.totalorder %s26, 7
      %p212 = por %p210, %p211
      %p213 = scmp.ne.s32.totalorder %s202, %s203
      %p214 = scmp.eq.s32.totalorder %s26, 0
      %p215 = por %p213, %p214
      %p216 = scmp.ne.s32.totalorder %s202, %s203
      %p217 = scmp.eq.s32.totalorder %s27, 7
      %p218 = por %p216, %p217
      %p220 = scmp.ne.s32.totalorder %s203, %s219
      %p221 = scmp.eq.s32.totalorder %s27, 0
      %p222 = por %p220, %p221
      %s223 = ssub.s32 %s29, %s36
      %p224 = scmp.eq.s32.totalorder %s223, 0
      %s226 = sadd.s32 %s225, 1
      %s227 = scalar_select %p224, %s225, %s226
      %p230 = pneg %p224
      %p231 = scmp.eq.s32.totalorder %s21, 7
      %p232 = por %p230, %p231
      %p233 = scmp.ne.s32.totalorder %s225, %s228
      %p234 = scmp.eq.s32.totalorder %s21, 0
      %p235 = por %p233, %p234
      %p236 = scmp.ne.s32.totalorder %s225, %s228
      %p237 = scmp.eq.s32.totalorder %s26, 7
      %p238 = por %p236, %p237
      %p239 = scmp.ne.s32.totalorder %s228, %s229
      %p240 = scmp.eq.s32.totalorder %s26, 0
      %p241 = por %p239, %p240
      %p242 = scmp.ne.s32.totalorder %s228, %s229
      %p243 = scmp.eq.s32.totalorder %s27, 7
      %p244 = por %p242, %p243
      %p246 = scmp.ne.s32.totalorder %s229, %s245
      %p247 = scmp.eq.s32.totalorder %s27, 0
      %p248 = por %p246, %p247
      %s249 = ssub.s32 %s29, %s36
      %p250 = scmp.eq.s32.totalorder %s249, 0
      %s252 = sadd.s32 %s251, 1
      %s253 = scalar_select %p250, %s251, %s252
      %p256 = pneg %p250
      %p257 = scmp.eq.s32.totalorder %s21, 7
      %p258 = por %p256, %p257
      %p259 = scmp.ne.s32.totalorder %s251, %s254
      %p260 = scmp.eq.s32.totalorder %s21, 0
      %p261 = por %p259, %p260
      %p262 = scmp.ne.s32.totalorder %s251, %s254
      %p263 = scmp.eq.s32.totalorder %s26, 7
      %p264 = por %p262, %p263
      %p265 = scmp.ne.s32.totalorder %s254, %s255
      %p266 = scmp.eq.s32.totalorder %s26, 0
      %p267 = por %p265, %p266
      %p268 = scmp.ne.s32.totalorder %s254, %s255
      %p269 = scmp.eq.s32.totalorder %s27, 7
      %p270 = por %p268, %p269
      %p272 = scmp.ne.s32.totalorder %s255, %s271
      %p273 = scmp.eq.s32.totalorder %s27, 0
      %p274 = por %p272, %p273
      %s275 = ssub.s32 %s29, %s36
      %p276 = scmp.eq.s32.totalorder %s275, 0
      %s278 = sadd.s32 %s277, 1
      %s279 = scalar_select %p276, %s277, %s278
      %p282 = pneg %p276
      %p283 = scmp.eq.s32.totalorder %s21, 7
      %p284 = por %p282, %p283
      %p285 = scmp.ne.s32.totalorder %s277, %s280
      %p286 = scmp.eq.s32.totalorder %s21, 0
      %p287 = por %p285, %p286
      %p288 = scmp.ne.s32.totalorder %s277, %s280
      %p289 = scmp.eq.s32.totalorder %s26, 7
      %p290 = por %p288, %p289
      %p291 = scmp.ne.s32.totalorder %s280, %s281
      %p292 = scmp.eq.s32.totalorder %s26, 0
      %p293 = por %p291, %p292
      %p294 = scmp.ne.s32.totalorder %s280, %s281
      %p295 = scmp.eq.s32.totalorder %s27, 7
      %p296 = por %p294, %p295
      %p298 = scmp.ne.s32.totalorder %s281, %s297
      %p299 = scmp.eq.s32.totalorder %s27, 0
      %p300 = por %p298, %p299
      %s301 = ssub.s32 %s29, %s36
      %p302 = scmp.eq.s32.totalorder %s301, 0
      %s304 = sadd.s32 %s303, 1
      %s305 = scalar_select %p302, %s303, %s304
      %p308 = pneg %p302
      %p309 = scmp.eq.s32.totalorder %s21, 7
      %p310 = por %p308, %p309
      %p311 = scmp.ne.s32.totalorder %s303, %s306
      %p312 = scmp.eq.s32.totalorder %s21, 0
      %p313 = por %p311, %p312
      %p314 = scmp.ne.s32.totalorder %s303, %s306
      %p315 = scmp.eq.s32.totalorder %s26, 7
      %p316 = por %p314, %p315
      %p317 = scmp.ne.s32.totalorder %s306, %s307
      %p318 = scmp.eq.s32.totalorder %s26, 0
      %p319 = por %p317, %p318
      %p320 = scmp.ne.s32.totalorder %s306, %s307
      %p321 = scmp.eq.s32.totalorder %s27, 7
      %p322 = por %p320, %p321
      %p324 = scmp.ne.s32.totalorder %s307, %s323
      %p325 = scmp.eq.s32.totalorder %s27, 0
      %p326 = por %p324, %p325
      %s328 = sadd.s32 %s327, 1
      %p331 = scmp.eq.s32.totalorder %s21, 7
      %p332 = scmp.ne.s32.totalorder %s327, %s329
      %p333 = scmp.eq.s32.totalorder %s21, 0
      %p334 = por %p332, %p333
      %p335 = scmp.ne.s32.totalorder %s327, %s329
      %p336 = scmp.eq.s32.totalorder %s26, 7
      %p337 = por %p335, %p336
      %p338 = scmp.ne.s32.totalorder %s329, %s330
      %p339 = scmp.eq.s32.totalorder %s26, 0
      %p340 = por %p338, %p339
      %p341 = scmp.ne.s32.totalorder %s329, %s330
      %p342 = scmp.eq.s32.totalorder %s27, 7
      %p343 = por %p341, %p342
      %p345 = scmp.ne.s32.totalorder %s330, %s344
      %p346 = scmp.eq.s32.totalorder %s27, 0
      %p347 = por %p345, %p346
      %s348 = ssub.s32 %s28, %s40
      %p349 = scmp.eq.s32.totalorder %s348, 0
      %s351 = sadd.s32 %s350, 1
      %s352 = scalar_select %p349, %s350, %s351
      %p355 = pneg %p349
      %p356 = scmp.eq.s32.totalorder %s21, 7
      %p357 = por %p355, %p356
      %p358 = scmp.ne.s32.totalorder %s350, %s353
      %p359 = scmp.eq.s32.totalorder %s21, 0
      %p360 = por %p358, %p359
      %p361 = scmp.ne.s32.totalorder %s350, %s353
      %p362 = scmp.eq.s32.totalorder %s26, 7
      %p363 = por %p361, %p362
      %p364 = scmp.ne.s32.totalorder %s353, %s354
      %p365 = scmp.eq.s32.totalorder %s26, 0
      %p366 = por %p364, %p365
      %p367 = scmp.ne.s32.totalorder %s353, %s354
      %p368 = scmp.eq.s32.totalorder %s27, 7
      %p369 = por %p367, %p368
      %p371 = scmp.ne.s32.totalorder %s354, %s370
      %p372 = scmp.eq.s32.totalorder %s27, 0
      %p373 = por %p371, %p372
      %p374 = scmp.le.s32.totalorder 1, %s21
      %p375 = scmp.lt.s32.totalorder %s21, 9
      %p376 = pnand %p374, %p375
      %p377 = pneg %p376
      // Predicated region
      $region9: #{tpu_custom_call.1} parent=5 // pred_check
        _
      $region10: #{tpu_custom_call.1} parent=5 // pred_check_branch
        %379 = sbr.rel (%p376) target = $region12
      $region11: #{tpu_custom_call.1} parent=5 // pred_region
        %s380 = ssub.s32 %s21, 1
        // Predicated region
        $region13: #{tpu_custom_call.1} parent=11 // pred_check
          %p381 = pneg %p340
        $region14: #{tpu_custom_call.1} parent=11 // pred_check_branch
          %383 = sbr.rel (%p381) target = $region16
        $region15: #{tpu_custom_call.1} parent=11 // pred_region
          _
        $region16: #{tpu_custom_call.1} parent=11 // pred_fallthru
          _
      $region12: #{tpu_custom_call.1} parent=5 // pred_fallthru
        _
      %p384 = scmp.lt.s32.totalorder %s21, 8
      // Predicated region
      $region17: #{tpu_custom_call.1} parent=5 // pred_check
        %p385 = pneg %p384
      $region18: #{tpu_custom_call.1} parent=5 // pred_check_branch
        %387 = sbr.rel (%p385) target = $region20
      $region19: #{tpu_custom_call.1} parent=5 // pred_region
        // Predicated region
        $region21: #{tpu_custom_call.1} parent=19 // pred_check
          %p388 = pneg %p53
        $region22: #{tpu_custom_call.1} parent=19 // pred_check_branch
          %390 = sbr.rel (%p388) target = $region24
        $region23: #{tpu_custom_call.1} parent=19 // pred_region
          %p391 = scmp.lt.s32.totalorder %s28, 1
          %s392 = scalar_select %p391, %s28, 1
          %s393 = smul.addr %s392, 8
          %s394 = scalar_lea.vmem %s0, %s393
        $region24: #{tpu_custom_call.1} parent=19 // pred_fallthru
          _
        // Predicated region
        $region25: #{tpu_custom_call.1} parent=19 // pred_check
          %p395 = pneg %p79
        $region26: #{tpu_custom_call.1} parent=19 // pred_check_branch
          %397 = sbr.rel (%p395) target = $region28
        $region27: #{tpu_custom_call.1} parent=19 // pred_region
          %p398 = scmp.lt.s32.totalorder %s28, 1
          %s399 = scalar_select %p398, %s28, 1
          %s400 = smul.addr %s399, 8
          %s401 = scalar_lea.vmem %s1, %s400
        $region28: #{tpu_custom_call.1} parent=19 // pred_fallthru
          _
        // Predicated region
        $region29: #{tpu_custom_call.1} parent=19 // pred_check
          %p402 = pneg %p105
        $region30: #{tpu_custom_call.1} parent=19 // pred_check_branch
          %404 = sbr.rel (%p402) target = $region32
        $region31: #{tpu_custom_call.1} parent=19 // pred_region
          %p405 = scmp.lt.s32.totalorder %s28, 1
          %s406 = scalar_select %p405, %s28, 1
          %s407 = smul.addr %s406, 8
          %s408 = scalar_lea.vmem %s2, %s407
        $region32: #{tpu_custom_call.1} parent=19 // pred_fallthru
          _
        // Predicated region
        $region33: #{tpu_custom_call.1} parent=19 // pred_check
          %p409 = pneg %p131
        $region34: #{tpu_custom_call.1} parent=19 // pred_check_branch
          %411 = sbr.rel (%p409) target = $region36
        $region35: #{tpu_custom_call.1} parent=19 // pred_region
          %p412 = scmp.lt.s32.totalorder %s28, 1
          %s413 = scalar_select %p412, %s28, 1
          %s414 = scalar_lea.vmem %s3, %s413
        $region36: #{tpu_custom_call.1} parent=19 // pred_fallthru
          _
        // Predicated region
        $region37: #{tpu_custom_call.1} parent=19 // pred_check
          %p415 = pneg %p157
        $region38: #{tpu_custom_call.1} parent=19 // pred_check_branch
          %417 = sbr.rel (%p415) target = $region40
        $region39: #{tpu_custom_call.1} parent=19 // pred_region
          %p418 = scmp.lt.s32.totalorder %s29, 3
          %s419 = scalar_select %p418, %s29, 3
          %s420 = smul.addr %s419, 4
          %s421 = smul.addr %s420, 8
          %s422 = scalar_lea.vmem %s4, %s421
        $region40: #{tpu_custom_call.1} parent=19 // pred_fallthru
          _
        // Predicated region
        $region41: #{tpu_custom_call.1} parent=19 // pred_check
          %p423 = pneg %p183
        $region42: #{tpu_custom_call.1} parent=19 // pred_check_branch
          %425 = sbr.rel (%p423) target = $region44
        $region43: #{tpu_custom_call.1} parent=19 // pred_region
          %p426 = scmp.lt.s32.totalorder %s29, 3
          %s427 = scalar_select %p426, %s29, 3
          %s428 = scalar_lea.vmem %s5, %s427
        $region44: #{tpu_custom_call.1} parent=19 // pred_fallthru
          _
        // Predicated region
        $region45: #{tpu_custom_call.1} parent=19 // pred_check
          %p429 = pneg %p209
        $region46: #{tpu_custom_call.1} parent=19 // pred_check_branch
          %431 = sbr.rel (%p429) target = $region48
        $region47: #{tpu_custom_call.1} parent=19 // pred_region
          %p432 = scmp.lt.s32.totalorder %s29, 3
          %s433 = scalar_select %p432, %s29, 3
          %s434 = smul.addr %s433, 4
          %s435 = smul.addr %s434, 8
          %s436 = scalar_lea.vmem %s6, %s435
        $region48: #{tpu_custom_call.1} parent=19 // pred_fallthru
          _
        // Predicated region
        $region49: #{tpu_custom_call.1} parent=19 // pred_check
          %p437 = pneg %p235
        $region50: #{tpu_custom_call.1} parent=19 // pred_check_branch
          %439 = sbr.rel (%p437) target = $region52
        $region51: #{tpu_custom_call.1} parent=19 // pred_region
          %p440 = scmp.lt.s32.totalorder %s29, 3
          %s441 = scalar_select %p440, %s29, 3
          %s442 = scalar_lea.vmem %s7, %s441
        $region52: #{tpu_custom_call.1} parent=19 // pred_fallthru
          _
        // Predicated region
        $region53: #{tpu_custom_call.1} parent=19 // pred_check
          %p443 = pneg %p261
        $region54: #{tpu_custom_call.1} parent=19 // pred_check_branch
          %445 = sbr.rel (%p443) target = $region56
        $region55: #{tpu_custom_call.1} parent=19 // pred_region
          %p446 = scmp.lt.s32.totalorder %s29, 3
          %s447 = scalar_select %p446, %s29, 3
          %s448 = smul.addr %s447, 4
          %s449 = smul.addr %s448, 8
          %s450 = scalar_lea.vmem %s8, %s449
        $region56: #{tpu_custom_call.1} parent=19 // pred_fallthru
          _
        // Predicated region
        $region57: #{tpu_custom_call.1} parent=19 // pred_check
          %p451 = pneg %p287
        $region58: #{tpu_custom_call.1} parent=19 // pred_check_branch
          %453 = sbr.rel (%p451) target = $region60
        $region59: #{tpu_custom_call.1} parent=19 // pred_region
          %p454 = scmp.lt.s32.totalorder %s29, 3
          %s455 = scalar_select %p454, %s29, 3
          %s456 = scalar_lea.vmem %s9, %s455
        $region60: #{tpu_custom_call.1} parent=19 // pred_fallthru
          _
        // Predicated region
        $region61: #{tpu_custom_call.1} parent=19 // pred_check
          %p457 = pneg %p313
        $region62: #{tpu_custom_call.1} parent=19 // pred_check_branch
          %459 = sbr.rel (%p457) target = $region64
        $region63: #{tpu_custom_call.1} parent=19 // pred_region
          %p460 = scmp.lt.s32.totalorder %s29, 3
          %s461 = scalar_select %p460, %s29, 3
          %s462 = smul.addr %s461, 8
          %s463 = scalar_lea.vmem %s10, %s462
        $region64: #{tpu_custom_call.1} parent=19 // pred_fallthru
          _
      $region20: #{tpu_custom_call.1} parent=5 // pred_fallthru
        _
      %p464 = scmp.le.s32.totalorder 1, %s21
      %p465 = scmp.lt.s32.totalorder %s21, 9
      %p466 = pnand %p464, %p465
      %p467 = pneg %p466
      // Predicated region
      $region65: #{tpu_custom_call.1} parent=5 // pred_check
        _
      $region66: #{tpu_custom_call.1} parent=5 // pred_check_branch
        %469 = sbr.rel (%p466) target = $region68
      $region67: #{tpu_custom_call.1} parent=5 // pred_region
        %s470 = ssub.s32 %s21, 1
        %p471 = scmp.lt.s32.totalorder %s30, 1
        %s472 = scalar_select %p471, %s30, 1
        %s473 = smul.addr %s472, 8
        %s474 = scalar_lea.vmem %s0, %s473
        %p475 = pneg %p59
        %p476 = pneg %p56
        %p477 = scmp.lt.s32.totalorder %s30, 1
        %s478 = scalar_select %p477, %s30, 1
        %s479 = smul.addr %s478, 8
        %s480 = scalar_lea.vmem %s1, %s479
        %p481 = pneg %p85
        %p482 = pneg %p82
        %p483 = scmp.lt.s32.totalorder %s30, 1
        %s484 = scalar_select %p483, %s30, 1
        %s485 = smul.addr %s484, 8
        %s486 = scalar_lea.vmem %s2, %s485
        %p487 = pneg %p111
        %p488 = pneg %p108
        %p489 = scmp.lt.s32.totalorder %s30, 1
        %s490 = scalar_select %p489, %s30, 1
        %s491 = scalar_lea.vmem %s3, %s490
        %p492 = pneg %p137
        %p493 = pneg %p134
        %p494 = scmp.lt.s32.totalorder %s31, 3
        %s495 = scalar_select %p494, %s31, 3
        %s496 = smul.addr %s495, 4
        %s497 = smul.addr %s496, 8
        %s498 = scalar_lea.vmem %s4, %s497
        %p499 = pneg %p163
        %p500 = pneg %p160
        %p501 = scmp.lt.s32.totalorder %s31, 3
        %s502 = scalar_select %p501, %s31, 3
        %s503 = scalar_lea.vmem %s5, %s502
        %p504 = pneg %p189
        %p505 = pneg %p186
        %p506 = scmp.lt.s32.totalorder %s31, 3
        %s507 = scalar_select %p506, %s31, 3
        %s508 = smul.addr %s507, 4
        %s509 = smul.addr %s508, 8
        %s510 = scalar_lea.vmem %s6, %s509
        %p511 = pneg %p215
        %p512 = pneg %p212
        %p513 = scmp.lt.s32.totalorder %s31, 3
        %s514 = scalar_select %p513, %s31, 3
        %s515 = scalar_lea.vmem %s7, %s514
        %p516 = pneg %p241
        %p517 = pneg %p238
        %p518 = scmp.lt.s32.totalorder %s31, 3
        %s519 = scalar_select %p518, %s31, 3
        %s520 = smul.addr %s519, 4
        %s521 = smul.addr %s520, 8
        %s522 = scalar_lea.vmem %s8, %s521
        %p523 = pneg %p267
        %p524 = pneg %p264
        %p525 = scmp.lt.s32.totalorder %s31, 3
        %s526 = scalar_select %p525, %s31, 3
        %s527 = scalar_lea.vmem %s9, %s526
        %p528 = pneg %p293
        %p529 = pneg %p290
        %p530 = scmp.lt.s32.totalorder %s31, 3
        %s531 = scalar_select %p530, %s31, 3
        %s532 = smul.addr %s531, 8
        %s533 = scalar_lea.vmem %s10, %s532
        %p534 = pneg %p319
        %p535 = pneg %p316
        %p536 = pneg %p340
        %p537 = pneg %p337
        %p538 = pneg %p366
        %p539 = pneg %p363
        %s540 = sand.u32 %s353, 1
        %s541 = scalar_lea.sflag [#allocation3], %s540
        %s542 = sand.u32 %s353, 1
        %s543 = smul.addr %s542, 8
        %s544 = scalar_lea.vmem [#allocation2], %s543
        %p545 = scmp.lt.s32.totalorder %s30, 1
        %s546 = scalar_select %p545, %s30, 1
        %s547 = smul.addr %s546, 8
        %s548 = scalar_lea.vmem %s0, %s547
        %p549 = scmp.lt.s32.totalorder %s30, 1
        %s550 = scalar_select %p549, %s30, 1
        %s551 = smul.addr %s550, 8
        %s552 = scalar_lea.vmem %s1, %s551
        %p553 = scmp.lt.s32.totalorder %s30, 1
        %s554 = scalar_select %p553, %s30, 1
        %s555 = smul.addr %s554, 8
        %s556 = scalar_lea.vmem %s2, %s555
        %p557 = scmp.lt.s32.totalorder %s30, 1
        %s558 = scalar_select %p557, %s30, 1
        %s559 = scalar_lea.vmem %s3, %s558
        %p560 = scmp.lt.s32.totalorder %s31, 3
        %s561 = scalar_select %p560, %s31, 3
        %s562 = smul.addr %s561, 4
        %s563 = smul.addr %s562, 8
        %s564 = scalar_lea.vmem %s4, %s563
        %p565 = scmp.lt.s32.totalorder %s31, 3
        %s566 = scalar_select %p565, %s31, 3
        %s567 = scalar_lea.vmem %s5, %s566
        %p568 = scmp.lt.s32.totalorder %s31, 3
        %s569 = scalar_select %p568, %s31, 3
        %s570 = smul.addr %s569, 4
        %s571 = smul.addr %s570, 8
        %s572 = scalar_lea.vmem %s6, %s571
        %p573 = scmp.lt.s32.totalorder %s31, 3
        %s574 = scalar_select %p573, %s31, 3
        %s575 = scalar_lea.vmem %s7, %s574
        %p576 = scmp.lt.s32.totalorder %s31, 3
        %s577 = scalar_select %p576, %s31, 3
        %s578 = smul.addr %s577, 4
        %s579 = smul.addr %s578, 8
        %s580 = scalar_lea.vmem %s8, %s579
        %p581 = scmp.lt.s32.totalorder %s31, 3
        %s582 = scalar_select %p581, %s31, 3
        %s583 = scalar_lea.vmem %s9, %s582
        %p584 = scmp.lt.s32.totalorder %s31, 3
        %s585 = scalar_select %p584, %s31, 3
        %s586 = smul.addr %s585, 8
        %s587 = scalar_lea.vmem %s10, %s586
        %v588 = vld [vmem:[%s548] sm:$0xff]
        %v589 = vld [vmem:[%s564] sm:$0xff]
        %v590 = vld [vmem:[%s564 + $0x8] sm:$0xff]
        %v591 = vld [vmem:[%s564 + $0x10] sm:$0xff]
        %v592 = vld [vmem:[%s564 + $0x18] sm:$0xff]
        %v593 = vld [vmem:[%s567] sm:$0x1]
        %v595 = vperm.slane %v593, 0
        %vm597 = vcmask 261120
        %v599 = vsel %vm597, %v588, 0
        %601 = vmatpush.msra.mxu0 0.0
        %602 = vmatpush.msra.mxu0 0.0
        %603 = vmatpush.msra.mxu0 0.0
        %604 = vmatpush.msra.mxu0 0.0
        %605 = vmatpush.msra.mxu0 0.0
        %606 = vmatpush.msra.mxu0 0.0
        %607 = vmatpush.msra.mxu0 0.0
        %608 = vmatpush.msra.mxu0 0.0
        %609 = vmatpush.msra.mxu0 0.0
        %610 = vmatpush.msra.mxu0 0.0
        %611 = vmatpush.msra.mxu0 0.0
        %612 = vmatpush.msra.mxu0 0.0
        %613 = vmatpush.msra.mxu0 %v592
        %614 = vmatpush.msra.mxu0 %v591
        %615 = vmatpush.msra.mxu0 %v590
        %616 = vmatpush.msra.mxu0 %v589
        %617 = vmatmul.f32.gmra.mxu0 %v599
        %v618 = vpop.f32.mrf.mxu0
        %v619 = vadd.f32 %v595, %v618
        %620 = vdwg.mxu0
        %v621 = vld [vmem:[%s552] sm:$0xff]
        %v622 = vld [vmem:[%s572] sm:$0xff]
        %v623 = vld [vmem:[%s572 + $0x8] sm:$0xff]
        %v624 = vld [vmem:[%s572 + $0x10] sm:$0xff]
        %v625 = vld [vmem:[%s572 + $0x18] sm:$0xff]
        %v626 = vld [vmem:[%s575] sm:$0x1]
        %v628 = vperm.slane %v626, 0
        %v631 = vsel %vm597, %v621, 0
        %633 = vmatpush.msra.mxu0 0.0
        %634 = vmatpush.msra.mxu0 0.0
        %635 = vmatpush.msra.mxu0 0.0
        %636 = vmatpush.msra.mxu0 0.0
        %637 = vmatpush.msra.mxu0 0.0
        %638 = vmatpush.msra.mxu0 0.0
        %639 = vmatpush.msra.mxu0 0.0
        %640 = vmatpush.msra.mxu0 0.0
        %641 = vmatpush.msra.mxu0 0.0
        %642 = vmatpush.msra.mxu0 0.0
        %643 = vmatpush.msra.mxu0 0.0
        %644 = vmatpush.msra.mxu0 0.0
        %645 = vmatpush.msra.mxu0 %v625
        %646 = vmatpush.msra.mxu0 %v624
        %647 = vmatpush.msra.mxu0 %v623
        %648 = vmatpush.msra.mxu0 %v622
        %649 = vmatmul.f32.gmra.mxu0 %v631
        %v650 = vpop.f32.mrf.mxu0
        %v651 = vadd.f32 %v628, %v650
        %652 = vdwg.mxu0
        %v653 = vld [vmem:[%s556] sm:$0xff]
        %v654 = vld [vmem:[%s580] sm:$0xff]
        %v655 = vld [vmem:[%s580 + $0x8] sm:$0xff]
        %v656 = vld [vmem:[%s580 + $0x10] sm:$0xff]
        %v657 = vld [vmem:[%s580 + $0x18] sm:$0xff]
        %v658 = vld [vmem:[%s583] sm:$0x1]
        %v660 = vperm.slane %v658, 0
        %v663 = vsel %vm597, %v653, 0
        %665 = vmatpush.msra.mxu0 0.0
        %666 = vmatpush.msra.mxu0 0.0
        %667 = vmatpush.msra.mxu0 0.0
        %668 = vmatpush.msra.mxu0 0.0
        %669 = vmatpush.msra.mxu0 0.0
        %670 = vmatpush.msra.mxu0 0.0
        %671 = vmatpush.msra.mxu0 0.0
        %672 = vmatpush.msra.mxu0 0.0
        %673 = vmatpush.msra.mxu0 0.0
        %674 = vmatpush.msra.mxu0 0.0
        %675 = vmatpush.msra.mxu0 0.0
        %676 = vmatpush.msra.mxu0 0.0
        %677 = vmatpush.msra.mxu0 %v657
        %678 = vmatpush.msra.mxu0 %v656
        %679 = vmatpush.msra.mxu0 %v655
        %680 = vmatpush.msra.mxu0 %v654
        %681 = vmatmul.f32.gmra.mxu0 %v663
        %v682 = vpop.f32.mrf.mxu0
        %v683 = vadd.f32 %v660, %v682
        %684 = vdwg.mxu0
        %v685 = vld [vmem:[%s559] sm:$0x1]
        %v687 = vperm.slane %v685, 0
        %vm689 = vcmask 64512
        %v691 = vsel %vm689, %v619, 0
        %v694 = vsel %vm689, %v651, 0
        %696 = vmatpush.xpose.msra.mxu0 0.0
        %697 = vmatpush.xpose.msra.mxu0 0.0
        %698 = vmatpush.xpose.msra.mxu0 0.0
        %699 = vmatpush.xpose.msra.mxu0 0.0
        %700 = vmatpush.xpose.msra.mxu0 0.0
        %701 = vmatpush.xpose.msra.mxu0 0.0
        %702 = vmatpush.xpose.msra.mxu0 0.0
        %703 = vmatpush.xpose.msra.mxu0 0.0
        %704 = vmatpush.xpose.msra.mxu0 0.0
        %705 = vmatpush.xpose.msra.mxu0 0.0
        %706 = vmatpush.xpose.msra.mxu0 0.0
        %707 = vmatpush.xpose.msra.mxu0 0.0
        %708 = vmatpush.xpose.msra.mxu0 0.0
        %709 = vmatpush.xpose.msra.mxu0 0.0
        %710 = vmatpush.xpose.msra.mxu0 0.0
        %711 = vmatpush.xpose.msra.mxu0 %v694
        %712 = vmatmul.f32.gmra.mxu0 %v691
        %v713 = vpop.f32.mrf.mxu0
        %v714 = vadd.f32 %v687, %v713
        %715 = vdwg.mxu0
        %v716 = vsel %vm689, %v714, -inf
        %717 = vmax.xlane.f32.xlu0 %v716
        %v718 = vpop.xlane.xlu0 %717
        %v719 = vsub.f32 %v714, %v718
        %v720 = vmul.f32 %v719, 1.442695
        %v721 = vpow.pop %v720
        %v722 = vsel %vm689, %v721, 0.0
        %723 = vadd.xlane.f32.xlu0 %v722
        %v724 = vpop.xlane.xlu0 %723
        %v725 = vrcp.pop %v724
        %v726 = vmul.f32 %v724, %v725
        %v727 = vsub.f32 1.0, %v726
        %v728 = vmul.f32 %v725, %v727
        %v729 = vadd.f32 %v725, %v728
        %vm730 = vweird.f32 %v724
        %vm731 = vweird.f32 %v725
        %vm732 = vmor %vm730, %vm731
        %v733 = vsel %vm732, %v725, %v729
        %v734 = vand.u32 2147483647, %v724
        %vm735 = vcmp.eq.f32.partialorder %v734, 8.507059e+37
        %v736 = vand.u32 %v724, 2147483648
        %v737 = vor.u32 1.1754944e-38, %v736
        %v738 = vsel %vm735, %v737, %v733
        %v739 = vmul.f32 %v721, %v738
        %v741 = vsel %vm689, %v739, 0
        %743 = vmatpush.msra.mxu0 0.0
        %744 = vmatpush.msra.mxu0 0.0
        %745 = vmatpush.msra.mxu0 0.0
        %746 = vmatpush.msra.mxu0 0.0
        %747 = vmatpush.msra.mxu0 0.0
        %748 = vmatpush.msra.mxu0 0.0
        %749 = vmatpush.msra.mxu0 0.0
        %750 = vmatpush.msra.mxu0 0.0
        %751 = vmatpush.msra.mxu0 0.0
        %752 = vmatpush.msra.mxu0 0.0
        %753 = vmatpush.msra.mxu0 0.0
        %754 = vmatpush.msra.mxu0 0.0
        %755 = vmatpush.msra.mxu0 0.0
        %756 = vmatpush.msra.mxu0 0.0
        %757 = vmatpush.msra.mxu0 0.0
        %758 = vmatpush.msra.mxu0 %v683
        %759 = vmatmul.f32.gmra.mxu0 %v741
        %v760 = vpop.f32.mrf.mxu0
        %v761 = vadd.f32 0.0, %v760
        %762 = vdwg.mxu0
        %v763 = vld [vmem:[%s587] sm:$0xff]
        %v765 = vsel %vm689, %v761, 0
        %767 = vmatpush.msra.mxu0 0.0
        %768 = vmatpush.msra.mxu0 0.0
        %769 = vmatpush.msra.mxu0 0.0
        %770 = vmatpush.msra.mxu0 0.0
        %771 = vmatpush.msra.mxu0 0.0
        %772 = vmatpush.msra.mxu0 0.0
        %773 = vmatpush.msra.mxu0 0.0
        %774 = vmatpush.msra.mxu0 0.0
        %775 = vmatpush.msra.mxu0 0.0
        %776 = vmatpush.msra.mxu0 0.0
        %777 = vmatpush.msra.mxu0 0.0
        %778 = vmatpush.msra.mxu0 0.0
        %779 = vmatpush.msra.mxu0 0.0
        %780 = vmatpush.msra.mxu0 0.0
        %781 = vmatpush.msra.mxu0 0.0
        %782 = vmatpush.msra.mxu0 %v763
        %783 = vmatmul.f32.gmra.mxu0 %v765
        %v784 = vpop.f32.mrf.mxu0
        %v785 = vadd.f32 0.0, %v784
        %786 = vdwg.mxu0
        %p787 = scmp.eq.s32.totalorder %s31, 0
        // Predicated region
        $region69: #{tpu_custom_call.1} parent=67 // pred_check
          %p788 = pneg %p787
        $region70: #{tpu_custom_call.1} parent=67 // pred_check_branch
          %790 = sbr.rel (%p788) target = $region72
        $region71: #{tpu_custom_call.1} parent=67 // pred_region
          %v791 = vld [vmem:[%s11] sm:$0x1]
          %v793 = vperm.slane %v791, 0
          %795 = vst.msk [vmem:[%s544] sm:$0xff] %vm597, %v793
        $region72: #{tpu_custom_call.1} parent=67 // pred_fallthru
          _
        %v796 = vld [vmem:[%s544] sm:$0xff]
        %v797 = vadd.f32 %v796, %v785
        %798 = vst.msk [vmem:[%s544] sm:$0xff] %vm597, %v797
        %s799 = sand.u32 %s353, 1
        %s800 = scalar_lea.sflag [#allocation3], %s799
        %s801 = sand.u32 %s353, 1
        %s802 = smul.addr %s801, 8
        %s803 = scalar_lea.vmem [#allocation2], %s802
        // Predicated region
        $region73: #{tpu_custom_call.1} parent=67 // pred_check
          %p804 = pneg %p363
        $region74: #{tpu_custom_call.1} parent=67 // pred_check_branch
          %806 = sbr.rel (%p804) target = $region76
        $region75: #{tpu_custom_call.1} parent=67 // pred_region
          %808 = vsyncadd %s800, 0
          %s809 = smul.addr %s30, 8
          %s810 = scalar_lea.hbm %s12, %s809
          %s812 = sshll.u32 %s803, 4
          %s813 = int_to_ptr.vmem [resolvable:$true] %s812
          %s814 = sshll.u32 %s810, 4
          %s815 = int_to_ptr.hbm [resolvable:$true] %s814
          %817 = dma.vmem_to_hbm [thread:$0]  %s813, 128, %s815, %s800
        $region76: #{tpu_custom_call.1} parent=67 // pred_fallthru
          _
      $region68: #{tpu_custom_call.1} parent=5 // pred_fallthru
        _
      %p818 = scmp.le.s32.totalorder 2, %s21
      // Predicated region
      $region77: #{tpu_custom_call.1} parent=5 // pred_check
        %p819 = pneg %p818
      $region78: #{tpu_custom_call.1} parent=5 // pred_check_branch
        %821 = sbr.rel (%p819) target = $region80
      $region79: #{tpu_custom_call.1} parent=5 // pred_region
        %s822 = ssub.s32 %s21, 2
        // Predicated region
        $region81: #{tpu_custom_call.1} parent=79 // pred_check
          %p823 = pneg %p369
        $region82: #{tpu_custom_call.1} parent=79 // pred_check_branch
          %825 = sbr.rel (%p823) target = $region84
        $region83: #{tpu_custom_call.1} parent=79 // pred_region
          %s826 = sand.u32 %s354, 1
          %s827 = scalar_lea.sflag [#allocation3], %s826
          %s828 = sand.u32 %s354, 1
          %s829 = smul.addr %s828, 8
          %s830 = scalar_lea.vmem [#allocation2], %s829
          %832 = dma.done %s827, 128
        $region84: #{tpu_custom_call.1} parent=79 // pred_fallthru
          _
      $region80: #{tpu_custom_call.1} parent=5 // pred_fallthru
        _
    $region6: #{tpu_custom_call.1} parent=1 // loop_footer
      %s25 = sadd.s32 1, %s21
    $region7: #{tpu_custom_call.1} parent=1 // loop_footer_branch
      %20 = sbr.rel target = $region3
    $region8: #{tpu_custom_call.1} parent=1 // loop_exit
      _
    %833 = vsyncpa [#allocation3], 1
    %s834 = scalar_lea.sflag [#allocation3], 1
    %835 = vsyncpa %s834, 1

</llo_original>
